<compile_context>
chip_gen: v7x
topology: tpu7x:2x2x1
jax: 0.10.0
libtpu: 0.0.40
codegen_flags: <defaults>
</compile_context>

<pallas_src>
import math

import jax
import jax.numpy as jnp
from jax.experimental import pallas as pl
from jax.experimental.pallas import tpu as pltpu

LANE = 128


def _round_up(n, m):
    return ((n + m - 1) // m) * m


def _cdiv(a, b):
    return -(-a // b)


def _make_mlp_kernel(act_dtype):
    """4-layer tanh MLP body.  MXU operands bf16, accumulation f32,
    bias-add f32, tanh in act_dtype (bf16 on v6e/v7x, f32 on v5e)."""

    def kernel(x_ref,
               w1_ref, b1_ref,
               w2_ref, b2_ref,
               w3_ref, b3_ref,
               w4_ref, b4_ref,
               o_ref):
        def layer(h, w_ref, b_ref):
            acc = jnp.dot(h.astype(w_ref.dtype), w_ref[...],
                          preferred_element_type=jnp.float32) + b_ref[...]
            return jnp.tanh(acc.astype(act_dtype))

        h = layer(x_ref[...], w1_ref, b1_ref)   # x is raw (tile, Fin) f32
        h = layer(h, w2_ref, b2_ref)
        h = layer(h, w3_ref, b3_ref)
        o_ref[...] = layer(h, w4_ref, b4_ref).astype(o_ref.dtype)

    return kernel


def prepare_params(params, *, weight_dtype=jnp.bfloat16):
    """One-time pad/cast of the weights (hoisted out of the per-call path).

    Only the hidden dim is padded to a multiple of 128 lanes (exact: zero
    pads, tanh(0)=0, zero weight rows/cols contribute nothing).  The input
    dim (Fin) and output dim (Fout) are left unpadded -- the kernel reads x
    raw and writes only the real output columns.  Weights go to bf16 for
    the MXU; biases stay f32."""
    w1, b1 = params["w1"], params["b1"]
    w2, b2 = params["w2"], params["b2"]
    w3, b3 = params["w3"], params["b3"]
    w4, b4 = params["w4"], params["b4"]
    Fin, H = w1.shape
    Fout = w4.shape[1]
    H_p = _round_up(H, LANE)

    prepped = {
        "w1": jnp.pad(w1, ((0, 0), (0, H_p - H))).astype(weight_dtype),
        "b1": jnp.pad(b1, ((0, 0), (0, H_p - H))),
        "w2": jnp.pad(w2, ((0, H_p - H), (0, H_p - H))).astype(weight_dtype),
        "b2": jnp.pad(b2, ((0, 0), (0, H_p - H))),
        "w3": jnp.pad(w3, ((0, H_p - H), (0, H_p - H))).astype(weight_dtype),
        "b3": jnp.pad(b3, ((0, 0), (0, H_p - H))),
        "w4": jnp.pad(w4, ((0, H_p - H), (0, 0))).astype(weight_dtype),
        "b4": b4,
    }
    meta = {"Fin": Fin, "H_p": H_p, "Fout": Fout}
    return prepped, meta


def llr_estimator_forward(x, prepped, meta, *, batch_tile=2048, min_steps=2,
                          act_dtype=jnp.bfloat16):
    """x: [B, 2*ofdm_size + 1] float32.
    prepped/meta: output of prepare_params().
    Returns [B, bits_per_symbol*ofdm_size] float32.

    On v5e pass act_dtype=jnp.float32 (no bf16 VPU/EUP path there)."""
    assert batch_tile % 8 == 0, "batch_tile must be a multiple of 8 (sublanes)"

    B, Fin = x.shape
    assert Fin == meta["Fin"], "input feature dim mismatch with params"
    H_p, Fout = meta["H_p"], meta["Fout"]

    # Tile selection: bound batch padding to <8 rows per step, and keep at
    # least `min_steps` grid steps for non-trivial batches so v7x can shard
    # the "parallel" axis across both TensorCores (harmless on v5e/v6e).
    n_steps = max(_cdiv(B, batch_tile), 1)
    if B >= 16:
        n_steps = max(n_steps, min_steps)
    tile = _round_up(_cdiv(B, n_steps), 8)
    B_p = n_steps * tile

    x_p = x if B_p == B else jnp.pad(x, ((0, B_p - B), (0, 0)))

    def x_map(i):
        return (i, 0)

    def w_map(i):
        return (0, 0)

    out_p = pl.pallas_call(
        _make_mlp_kernel(act_dtype),
        out_shape=jax.ShapeDtypeStruct((B_p, Fout), jnp.float32),
        grid_spec=pltpu.PrefetchScalarGridSpec(
            num_scalar_prefetch=0,
            grid=(n_steps,),
            in_specs=[
                pl.BlockSpec((tile, Fin), x_map),    # raw f32 x, lane dim == full dim
                pl.BlockSpec((Fin, H_p), w_map),     # w1 (33, H_p): sublane == full dim
                pl.BlockSpec((1, H_p), w_map),
                pl.BlockSpec((H_p, H_p), w_map),
                pl.BlockSpec((1, H_p), w_map),
                pl.BlockSpec((H_p, H_p), w_map),
                pl.BlockSpec((1, H_p), w_map),
                pl.BlockSpec((H_p, Fout), w_map),    # w4 cols unpadded (== full dim)
                pl.BlockSpec((1, Fout), w_map),
            ],
            out_specs=pl.BlockSpec((tile, Fout), x_map),  # write only real columns
        ),
        compiler_params=pltpu.CompilerParams(
            dimension_semantics=("parallel",),
            vmem_limit_bytes=32 * 1024 * 1024),
    )(x_p,
      prepped["w1"], prepped["b1"],
      prepped["w2"], prepped["b2"],
      prepped["w3"], prepped["b3"],
      prepped["w4"], prepped["b4"])

    return out_p if B_p == B else out_p[:B]


def init_params(key, ofdm_size, bits_per_symbol, expansion):
    """torch.nn.Linear default init: U(-1/sqrt(fan_in), 1/sqrt(fan_in)).
    Weights stored transposed ([in, out]) so the kernel computes x @ W."""
    in_dim = 2 * ofdm_size + 1
    hid = expansion * bits_per_symbol * ofdm_size
    out_dim = bits_per_symbol * ofdm_size

    dims = [(in_dim, hid), (hid, hid), (hid, hid), (hid, out_dim)]
    params = {}
    keys = jax.random.split(key, 2 * len(dims))
    for li, (fan_in, fan_out) in enumerate(dims):
        bound = 1.0 / math.sqrt(fan_in)
        w = jax.random.uniform(keys[2 * li], (fan_in, fan_out),
                               minval=-bound, maxval=bound, dtype=jnp.float32)
        b = jax.random.uniform(keys[2 * li + 1], (1, fan_out),
                               minval=-bound, maxval=bound, dtype=jnp.float32)
        params[f"w{li + 1}"] = w
        params[f"b{li + 1}"] = b
    return params


def reference_forward(x, params):
    h = jnp.tanh(x @ params["w1"] + params["b1"])
    h = jnp.tanh(h @ params["w2"] + params["b2"])
    h = jnp.tanh(h @ params["w3"] + params["b3"])
    return jnp.tanh(h @ params["w4"] + params["b4"])


if __name__ == "__main__":
    # Shapes consistent with the module:
    #   ofdm_size=16, bits_per_symbol=4, expansion=2
    #   input dim  = 2*16 + 1 = 33, hidden = 128, output = 64
    ofdm_size, bits_per_symbol, expansion = 16, 4, 2
    batch = 16  # small batch -> exercises the >=2-step path and tiny 8-row tiles

    key = jax.random.PRNGKey(0)
    k_x, k_p = jax.random.split(key)
    x = jax.random.normal(k_x, (batch, 2 * ofdm_size + 1), dtype=jnp.float32)
    params = init_params(k_p, ofdm_size, bits_per_symbol, expansion)

    prepped, meta = prepare_params(params)          # one-time weight pad/cast
    out = llr_estimator_forward(x, prepped, meta)   # bf16 tanh path (v6e/v7x)
    out = jax.block_until_ready(out)

    ref = jax.block_until_ready(reference_forward(x, params))
    assert out.shape == (batch, bits_per_symbol * ofdm_size)
    # bf16 MXU operands + bf16 tanh with f32 accumulation/bias: expect
    # ~1e-3..2e-2 max abs error on tanh-bounded outputs.
    assert jnp.max(jnp.abs(out - ref)) < 5e-2, "mismatch vs pure-JAX reference"

    print("KERNEL_OK")
</pallas_src>

<mosaic_0001>
module attributes {stable_mosaic.version = 11 : i64} {
  func.func @kernel(%arg0: i32, %arg1: memref<8x33xf32, #tpu.memory_space<vmem>>, %arg2: memref<33x128xbf16, #tpu.memory_space<vmem>>, %arg3: memref<1x128xf32, #tpu.memory_space<vmem>>, %arg4: memref<128x128xbf16, #tpu.memory_space<vmem>>, %arg5: memref<1x128xf32, #tpu.memory_space<vmem>>, %arg6: memref<128x128xbf16, #tpu.memory_space<vmem>>, %arg7: memref<1x128xf32, #tpu.memory_space<vmem>>, %arg8: memref<128x64xbf16, #tpu.memory_space<vmem>>, %arg9: memref<1x64xf32, #tpu.memory_space<vmem>>, %arg10: memref<8x64xf32, #tpu.memory_space<vmem>>) attributes {dimension_semantics = [#tpu.dimension_semantics<parallel>], iteration_bounds = array<i64: 2>, scalar_prefetch = 0 : i64, scratch_operands = 0 : i64, tpu.core_type = #tpu.core_type<tc>, window_params = [{transform_indices = @transform_0, window_bounds = array<i64: 8, 33>}, {pipeline_mode = #tpu.pipeline_mode<synchronous>, transform_indices = @transform_1, window_bounds = array<i64: 33, 128>}, {pipeline_mode = #tpu.pipeline_mode<synchronous>, transform_indices = @transform_2, window_bounds = array<i64: 1, 128>}, {pipeline_mode = #tpu.pipeline_mode<synchronous>, transform_indices = @transform_3, window_bounds = array<i64: 128, 128>}, {pipeline_mode = #tpu.pipeline_mode<synchronous>, transform_indices = @transform_4, window_bounds = array<i64: 1, 128>}, {pipeline_mode = #tpu.pipeline_mode<synchronous>, transform_indices = @transform_5, window_bounds = array<i64: 128, 128>}, {pipeline_mode = #tpu.pipeline_mode<synchronous>, transform_indices = @transform_6, window_bounds = array<i64: 1, 128>}, {pipeline_mode = #tpu.pipeline_mode<synchronous>, transform_indices = @transform_7, window_bounds = array<i64: 128, 64>}, {pipeline_mode = #tpu.pipeline_mode<synchronous>, transform_indices = @transform_8, window_bounds = array<i64: 1, 64>}, {transform_indices = @transform_9, window_bounds = array<i64: 8, 64>}]} {
    %c0 = arith.constant 0 : index
    %c0_0 = arith.constant 0 : index
    %0 = vector.load %arg1[%c0, %c0_0] : memref<8x33xf32, #tpu.memory_space<vmem>>, vector<8x33xf32>
    %1 = arith.truncf %0 : vector<8x33xf32> to vector<8x33xbf16>
    %c0_1 = arith.constant 0 : index
    %c0_2 = arith.constant 0 : index
    %2 = vector.load %arg2[%c0_1, %c0_2] : memref<33x128xbf16, #tpu.memory_space<vmem>>, vector<33x128xbf16>
    %cst = arith.constant dense<0.000000e+00> : vector<8x128xf32>
    %3 = tpu.matmul %1, %2, %cst {dimension_numbers = #tpu.dot_dimension_numbers<[1], [0], [0], [1], [0, 0, 1, 1], [], []>} : vector<8x33xbf16>, vector<33x128xbf16>, vector<8x128xf32> -> vector<8x128xf32>
    %c0_3 = arith.constant 0 : index
    %c0_4 = arith.constant 0 : index
    %4 = vector.load %arg3[%c0_3, %c0_4] : memref<1x128xf32, #tpu.memory_space<vmem>>, vector<1x128xf32>
    %5 = vector.broadcast %4 : vector<1x128xf32> to vector<8x128xf32>
    %6 = arith.addf %3, %5 : vector<8x128xf32>
    %7 = arith.truncf %6 : vector<8x128xf32> to vector<8x128xbf16>
    %8 = math.tanh %7 : vector<8x128xbf16>
    %c0_5 = arith.constant 0 : index
    %c0_6 = arith.constant 0 : index
    %9 = vector.load %arg4[%c0_5, %c0_6] : memref<128x128xbf16, #tpu.memory_space<vmem>>, vector<128x128xbf16>
    %cst_7 = arith.constant dense<0.000000e+00> : vector<8x128xf32>
    %10 = tpu.matmul %8, %9, %cst_7 {dimension_numbers = #tpu.dot_dimension_numbers<[1], [0], [0], [1], [0, 0, 1, 1], [], []>} : vector<8x128xbf16>, vector<128x128xbf16>, vector<8x128xf32> -> vector<8x128xf32>
    %c0_8 = arith.constant 0 : index
    %c0_9 = arith.constant 0 : index
    %11 = vector.load %arg5[%c0_8, %c0_9] : memref<1x128xf32, #tpu.memory_space<vmem>>, vector<1x128xf32>
    %12 = vector.broadcast %11 : vector<1x128xf32> to vector<8x128xf32>
    %13 = arith.addf %10, %12 : vector<8x128xf32>
    %14 = arith.truncf %13 : vector<8x128xf32> to vector<8x128xbf16>
    %15 = math.tanh %14 : vector<8x128xbf16>
    %c0_10 = arith.constant 0 : index
    %c0_11 = arith.constant 0 : index
    %16 = vector.load %arg6[%c0_10, %c0_11] : memref<128x128xbf16, #tpu.memory_space<vmem>>, vector<128x128xbf16>
    %cst_12 = arith.constant dense<0.000000e+00> : vector<8x128xf32>
    %17 = tpu.matmul %15, %16, %cst_12 {dimension_numbers = #tpu.dot_dimension_numbers<[1], [0], [0], [1], [0, 0, 1, 1], [], []>} : vector<8x128xbf16>, vector<128x128xbf16>, vector<8x128xf32> -> vector<8x128xf32>
    %c0_13 = arith.constant 0 : index
    %c0_14 = arith.constant 0 : index
    %18 = vector.load %arg7[%c0_13, %c0_14] : memref<1x128xf32, #tpu.memory_space<vmem>>, vector<1x128xf32>
    %19 = vector.broadcast %18 : vector<1x128xf32> to vector<8x128xf32>
    %20 = arith.addf %17, %19 : vector<8x128xf32>
    %21 = arith.truncf %20 : vector<8x128xf32> to vector<8x128xbf16>
    %22 = math.tanh %21 : vector<8x128xbf16>
    %c0_15 = arith.constant 0 : index
    %c0_16 = arith.constant 0 : index
    %23 = vector.load %arg8[%c0_15, %c0_16] : memref<128x64xbf16, #tpu.memory_space<vmem>>, vector<128x64xbf16>
    %cst_17 = arith.constant dense<0.000000e+00> : vector<8x64xf32>
    %24 = tpu.matmul %22, %23, %cst_17 {dimension_numbers = #tpu.dot_dimension_numbers<[1], [0], [0], [1], [0, 0, 1, 1], [], []>} : vector<8x128xbf16>, vector<128x64xbf16>, vector<8x64xf32> -> vector<8x64xf32>
    %c0_18 = arith.constant 0 : index
    %c0_19 = arith.constant 0 : index
    %25 = vector.load %arg9[%c0_18, %c0_19] : memref<1x64xf32, #tpu.memory_space<vmem>>, vector<1x64xf32>
    %26 = vector.broadcast %25 : vector<1x64xf32> to vector<8x64xf32>
    %27 = arith.addf %24, %26 : vector<8x64xf32>
    %28 = arith.truncf %27 : vector<8x64xf32> to vector<8x64xbf16>
    %29 = math.tanh %28 : vector<8x64xbf16>
    %30 = arith.extf %29 : vector<8x64xbf16> to vector<8x64xf32>
    %c0_20 = arith.constant 0 : index
    %c0_21 = arith.constant 0 : index
    %31 = vector.load %arg10[%c0_20, %c0_21] : memref<8x64xf32, #tpu.memory_space<vmem>>, vector<8x64xf32>
    tpu.vector_store %arg10[%c0_20, %c0_21], %30 {strides = array<i32>} : memref<8x64xf32, #tpu.memory_space<vmem>>, vector<8x64xf32>,
    return
  }
  func.func @transform_0(%arg0: i32) -> (i32, i32) {
    %c0_i32 = arith.constant 0 : i32
    %c0_i32_0 = arith.constant 0 : i32
    return %arg0, %c0_i32 : i32, i32
  }
  func.func @transform_1(%arg0: i32) -> (i32, i32) {
    %c0_i32 = arith.constant 0 : i32
    %c0_i32_0 = arith.constant 0 : i32
    %c0_i32_1 = arith.constant 0 : i32
    return %c0_i32, %c0_i32_0 : i32, i32
  }
  func.func @transform_2(%arg0: i32) -> (i32, i32) {
    %c0_i32 = arith.constant 0 : i32
    %c0_i32_0 = arith.constant 0 : i32
    %c0_i32_1 = arith.constant 0 : i32
    return %c0_i32, %c0_i32_0 : i32, i32
  }
  func.func @transform_3(%arg0: i32) -> (i32, i32) {
    %c0_i32 = arith.constant 0 : i32
    %c0_i32_0 = arith.constant 0 : i32
    %c0_i32_1 = arith.constant 0 : i32
    return %c0_i32, %c0_i32_0 : i32, i32
  }
  func.func @transform_4(%arg0: i32) -> (i32, i32) {
    %c0_i32 = arith.constant 0 : i32
    %c0_i32_0 = arith.constant 0 : i32
    %c0_i32_1 = arith.constant 0 : i32
    return %c0_i32, %c0_i32_0 : i32, i32
  }
  func.func @transform_5(%arg0: i32) -> (i32, i32) {
    %c0_i32 = arith.constant 0 : i32
    %c0_i32_0 = arith.constant 0 : i32
    %c0_i32_1 = arith.constant 0 : i32
    return %c0_i32, %c0_i32_0 : i32, i32
  }
  func.func @transform_6(%arg0: i32) -> (i32, i32) {
    %c0_i32 = arith.constant 0 : i32
    %c0_i32_0 = arith.constant 0 : i32
    %c0_i32_1 = arith.constant 0 : i32
    return %c0_i32, %c0_i32_0 : i32, i32
  }
  func.func @transform_7(%arg0: i32) -> (i32, i32) {
    %c0_i32 = arith.constant 0 : i32
    %c0_i32_0 = arith.constant 0 : i32
    %c0_i32_1 = arith.constant 0 : i32
    return %c0_i32, %c0_i32_0 : i32, i32
  }
  func.func @transform_8(%arg0: i32) -> (i32, i32) {
    %c0_i32 = arith.constant 0 : i32
    %c0_i32_0 = arith.constant 0 : i32
    %c0_i32_1 = arith.constant 0 : i32
    return %c0_i32, %c0_i32_0 : i32, i32
  }
  func.func @transform_9(%arg0: i32) -> (i32, i32) {
    %c0_i32 = arith.constant 0 : i32
    %c0_i32_0 = arith.constant 0 : i32
    return %arg0, %c0_i32 : i32, i32
  }
}

</mosaic_0001>

<llo_original>
// kernel: tpu_custom_call.1
$region0: #{tpu_custom_call.1}
  #allocation0 [shape = 'u32[]', space=smem, size = 0x4, offset = 0x4, fixed_abs, tag = 'smem constant byte address 0x4 - core index']
  #allocation1 [shape = 'u32[144,128]{1,0:T(1,128)}', space=vmem, size = 0x12000, scoped, tag = 'internal scratch']
  %s0 = inlined_call_operand.vmem [shape: f32[16,33], index: 0, kind: input, shape index: {}]
  %s1 = inlined_call_operand.vmem [shape: bf16[33,128], index: 1, kind: input, shape index: {}]
  %s2 = inlined_call_operand.vmem [shape: f32[1,128], index: 2, kind: input, shape index: {}]
  %s3 = inlined_call_operand.vmem [shape: bf16[128,128], index: 3, kind: input, shape index: {}]
  %s4 = inlined_call_operand.vmem [shape: f32[1,128], index: 4, kind: input, shape index: {}]
  %s5 = inlined_call_operand.hbm [shape: bf16[128,128], index: 5, kind: input, shape index: {}]
  %s6 = inlined_call_operand.vmem [shape: f32[1,128], index: 6, kind: input, shape index: {}]
  %s7 = inlined_call_operand.vmem [shape: bf16[128,64], index: 7, kind: input, shape index: {}]
  %s8 = inlined_call_operand.vmem [shape: f32[1,64], index: 8, kind: input, shape index: {}]
  %s9 = inlined_call_operand.hbm [shape: f32[16,64], index: 9, kind: output, shape index: {}]
  %s10 = sld [smem:[#allocation0]]
  $region73: #{tpu_custom_call.1} parent=0
    _
  %s12 = ssub.s32 1, %s10
  %s13 = scalar_select 0, %s12, %s10
  $region1: #{tpu_custom_call.1} parent=0
    #allocation2 [shape = 'u8[32768]{0}', space=vmem, size = 0x8000, scoped, tag = 'input window, operand 5, single buffered']
    #allocation3 [shape = 's32[2]{0}', space=sflag, size = 0x8, scoped, tag = 'scoped memory for tpu_custom_call.1']
    #allocation4 [shape = 's32[2]{0}', space=sflag, size = 0x8, scoped, tag = 'scoped memory for tpu_custom_call.1']
    #allocation5 [shape = 'u8[8192]{0}', space=vmem, size = 0x2000, scoped, tag = 'output window, operand 0']
    %14 = vsyncpa [#allocation3], 0
    %15 = vsyncpa [#allocation4], 0
    %s16 = scalar_lea.sflag [#allocation4], 1
    %17 = vsyncpa %s16, 0
    loop: start=0, step=1, limit=4
    $region2: #{tpu_custom_call.1} parent=1 // loop_pre_header
      _
    $region3: #{tpu_custom_call.1} parent=1 // loop_header
      %s19 = sphi 0, %s23
      %p20 = scmp.ge.s32.totalorder %s19, 4
      %s29 = sphi 0, %s31
      %s32 = sphi 0, %s29
      %s33 = sphi 0, %s32
      %s49 = sphi 0, %s33
      %s53 = sphi 0, %s53
      %s55 = sphi 0, %s53
      %s56 = sphi 0, %s55
      %s70 = sphi 0, %s56
      %s74 = sphi 0, %s74
      %s76 = sphi 0, %s74
      %s77 = sphi 0, %s76
      %s91 = sphi 0, %s77
      %s95 = sphi 0, %s95
      %s97 = sphi 0, %s95
      %s98 = sphi 0, %s97
      %s112 = sphi 0, %s98
      %s116 = sphi 0, %s116
      %s118 = sphi 0, %s116
      %s119 = sphi 0, %s118
      %s133 = sphi 0, %s119
      %s137 = sphi 0, %s137
      %s139 = sphi 0, %s137
      %s140 = sphi 0, %s139
      %s154 = sphi 0, %s140
      %s158 = sphi 0, %s158
      %s160 = sphi 0, %s158
      %s161 = sphi 0, %s160
      %s175 = sphi 0, %s161
      %s179 = sphi 0, %s179
      %s181 = sphi 0, %s179
      %s182 = sphi 0, %s181
      %s196 = sphi 0, %s182
      %s200 = sphi 0, %s200
      %s202 = sphi 0, %s200
      %s203 = sphi 0, %s202
      %s217 = sphi 0, %s203
      %s223 = sphi 0, %s225
      %s226 = sphi 0, %s223
      %s227 = sphi 0, %s226
      %s243 = sphi 0, %s227
    $region4: #{tpu_custom_call.1} parent=1 // loop_header_branch
      %22 = sbr.rel (%p20) target = $region8
    $region5: #{tpu_custom_call.1} parent=1 // loop_body
      %s24 = ssub.s32 %s19, 1
      %s25 = ssub.s32 %s19, 2
      %s26 = sadd.s32 %s19, 1
      %s27 = ssub.s32 %s19, %s26
      %p28 = scmp.eq.s32.totalorder %s27, 0
      %s30 = sadd.s32 %s29, 1
      %s31 = scalar_select %p28, %s29, %s30
      %p34 = pneg %p28
      %p35 = scmp.eq.s32.totalorder %s19, 1
      %p36 = por %p34, %p35
      %p37 = scmp.ne.s32.totalorder %s29, %s32
      %p38 = scmp.eq.s32.totalorder %s19, 0
      %p39 = por %p37, %p38
      %p40 = scmp.ne.s32.totalorder %s29, %s32
      %p41 = scmp.eq.s32.totalorder %s24, 1
      %p42 = por %p40, %p41
      %p43 = scmp.ne.s32.totalorder %s32, %s33
      %p44 = scmp.eq.s32.totalorder %s24, 0
      %p45 = por %p43, %p44
      %p46 = scmp.ne.s32.totalorder %s32, %s33
      %p47 = scmp.eq.s32.totalorder %s25, 1
      %p48 = por %p46, %p47
      %p50 = scmp.ne.s32.totalorder %s33, %s49
      %p51 = scmp.eq.s32.totalorder %s25, 0
      %p52 = por %p50, %p51
      %s54 = sadd.s32 %s53, 1
      %p57 = scmp.eq.s32.totalorder %s19, 1
      %p58 = scmp.ne.s32.totalorder %s53, %s55
      %p59 = scmp.eq.s32.totalorder %s19, 0
      %p60 = por %p58, %p59
      %p61 = scmp.ne.s32.totalorder %s53, %s55
      %p62 = scmp.eq.s32.totalorder %s24, 1
      %p63 = por %p61, %p62
      %p64 = scmp.ne.s32.totalorder %s55, %s56
      %p65 = scmp.eq.s32.totalorder %s24, 0
      %p66 = por %p64, %p65
      %p67 = scmp.ne.s32.totalorder %s55, %s56
      %p68 = scmp.eq.s32.totalorder %s25, 1
      %p69 = por %p67, %p68
      %p71 = scmp.ne.s32.totalorder %s56, %s70
      %p72 = scmp.eq.s32.totalorder %s25, 0
      %p73 = por %p71, %p72
      %s75 = sadd.s32 %s74, 1
      %p78 = scmp.eq.s32.totalorder %s19, 1
      %p79 = scmp.ne.s32.totalorder %s74, %s76
      %p80 = scmp.eq.s32.totalorder %s19, 0
      %p81 = por %p79, %p80
      %p82 = scmp.ne.s32.totalorder %s74, %s76
      %p83 = scmp.eq.s32.totalorder %s24, 1
      %p84 = por %p82, %p83
      %p85 = scmp.ne.s32.totalorder %s76, %s77
      %p86 = scmp.eq.s32.totalorder %s24, 0
      %p87 = por %p85, %p86
      %p88 = scmp.ne.s32.totalorder %s76, %s77
      %p89 = scmp.eq.s32.totalorder %s25, 1
      %p90 = por %p88, %p89
      %p92 = scmp.ne.s32.totalorder %s77, %s91
      %p93 = scmp.eq.s32.totalorder %s25, 0
      %p94 = por %p92, %p93
      %s96 = sadd.s32 %s95, 1
      %p99 = scmp.eq.s32.totalorder %s19, 1
      %p100 = scmp.ne.s32.totalorder %s95, %s97
      %p101 = scmp.eq.s32.totalorder %s19, 0
      %p102 = por %p100, %p101
      %p103 = scmp.ne.s32.totalorder %s95, %s97
      %p104 = scmp.eq.s32.totalorder %s24, 1
      %p105 = por %p103, %p104
      %p106 = scmp.ne.s32.totalorder %s97, %s98
      %p107 = scmp.eq.s32.totalorder %s24, 0
      %p108 = por %p106, %p107
      %p109 = scmp.ne.s32.totalorder %s97, %s98
      %p110 = scmp.eq.s32.totalorder %s25, 1
      %p111 = por %p109, %p110
      %p113 = scmp.ne.s32.totalorder %s98, %s112
      %p114 = scmp.eq.s32.totalorder %s25, 0
      %p115 = por %p113, %p114
      %s117 = sadd.s32 %s116, 1
      %p120 = scmp.eq.s32.totalorder %s19, 1
      %p121 = scmp.ne.s32.totalorder %s116, %s118
      %p122 = scmp.eq.s32.totalorder %s19, 0
      %p123 = por %p121, %p122
      %p124 = scmp.ne.s32.totalorder %s116, %s118
      %p125 = scmp.eq.s32.totalorder %s24, 1
      %p126 = por %p124, %p125
      %p127 = scmp.ne.s32.totalorder %s118, %s119
      %p128 = scmp.eq.s32.totalorder %s24, 0
      %p129 = por %p127, %p128
      %p130 = scmp.ne.s32.totalorder %s118, %s119
      %p131 = scmp.eq.s32.totalorder %s25, 1
      %p132 = por %p130, %p131
      %p134 = scmp.ne.s32.totalorder %s119, %s133
      %p135 = scmp.eq.s32.totalorder %s25, 0
      %p136 = por %p134, %p135
      %s138 = sadd.s32 %s137, 1
      %p141 = scmp.eq.s32.totalorder %s19, 1
      %p142 = scmp.ne.s32.totalorder %s137, %s139
      %p143 = scmp.eq.s32.totalorder %s19, 0
      %p144 = por %p142, %p143
      %p145 = scmp.ne.s32.totalorder %s137, %s139
      %p146 = scmp.eq.s32.totalorder %s24, 1
      %p147 = por %p145, %p146
      %p148 = scmp.ne.s32.totalorder %s139, %s140
      %p149 = scmp.eq.s32.totalorder %s24, 0
      %p150 = por %p148, %p149
      %p151 = scmp.ne.s32.totalorder %s139, %s140
      %p152 = scmp.eq.s32.totalorder %s25, 1
      %p153 = por %p151, %p152
      %p155 = scmp.ne.s32.totalorder %s140, %s154
      %p156 = scmp.eq.s32.totalorder %s25, 0
      %p157 = por %p155, %p156
      %s159 = sadd.s32 %s158, 1
      %p162 = scmp.eq.s32.totalorder %s19, 1
      %p163 = scmp.ne.s32.totalorder %s158, %s160
      %p164 = scmp.eq.s32.totalorder %s19, 0
      %p165 = por %p163, %p164
      %p166 = scmp.ne.s32.totalorder %s158, %s160
      %p167 = scmp.eq.s32.totalorder %s24, 1
      %p168 = por %p166, %p167
      %p169 = scmp.ne.s32.totalorder %s160, %s161
      %p170 = scmp.eq.s32.totalorder %s24, 0
      %p171 = por %p169, %p170
      %p172 = scmp.ne.s32.totalorder %s160, %s161
      %p173 = scmp.eq.s32.totalorder %s25, 1
      %p174 = por %p172, %p173
      %p176 = scmp.ne.s32.totalorder %s161, %s175
      %p177 = scmp.eq.s32.totalorder %s25, 0
      %p178 = por %p176, %p177
      %s180 = sadd.s32 %s179, 1
      %p183 = scmp.eq.s32.totalorder %s19, 1
      %p184 = scmp.ne.s32.totalorder %s179, %s181
      %p185 = scmp.eq.s32.totalorder %s19, 0
      %p186 = por %p184, %p185
      %p187 = scmp.ne.s32.totalorder %s179, %s181
      %p188 = scmp.eq.s32.totalorder %s24, 1
      %p189 = por %p187, %p188
      %p190 = scmp.ne.s32.totalorder %s181, %s182
      %p191 = scmp.eq.s32.totalorder %s24, 0
      %p192 = por %p190, %p191
      %p193 = scmp.ne.s32.totalorder %s181, %s182
      %p194 = scmp.eq.s32.totalorder %s25, 1
      %p195 = por %p193, %p194
      %p197 = scmp.ne.s32.totalorder %s182, %s196
      %p198 = scmp.eq.s32.totalorder %s25, 0
      %p199 = por %p197, %p198
      %s201 = sadd.s32 %s200, 1
      %p204 = scmp.eq.s32.totalorder %s19, 1
      %p205 = scmp.ne.s32.totalorder %s200, %s202
      %p206 = scmp.eq.s32.totalorder %s19, 0
      %p207 = por %p205, %p206
      %p208 = scmp.ne.s32.totalorder %s200, %s202
      %p209 = scmp.eq.s32.totalorder %s24, 1
      %p210 = por %p208, %p209
      %p211 = scmp.ne.s32.totalorder %s202, %s203
      %p212 = scmp.eq.s32.totalorder %s24, 0
      %p213 = por %p211, %p212
      %p214 = scmp.ne.s32.totalorder %s202, %s203
      %p215 = scmp.eq.s32.totalorder %s25, 1
      %p216 = por %p214, %p215
      %p218 = scmp.ne.s32.totalorder %s203, %s217
      %p219 = scmp.eq.s32.totalorder %s25, 0
      %p220 = por %p218, %p219
      %s221 = ssub.s32 %s19, %s26
      %p222 = scmp.eq.s32.totalorder %s221, 0
      %s224 = sadd.s32 %s223, 1
      %s225 = scalar_select %p222, %s223, %s224
      %p228 = pneg %p222
      %p229 = scmp.eq.s32.totalorder %s19, 1
      %p230 = por %p228, %p229
      %p231 = scmp.ne.s32.totalorder %s223, %s226
      %p232 = scmp.eq.s32.totalorder %s19, 0
      %p233 = por %p231, %p232
      %p234 = scmp.ne.s32.totalorder %s223, %s226
      %p235 = scmp.eq.s32.totalorder %s24, 1
      %p236 = por %p234, %p235
      %p237 = scmp.ne.s32.totalorder %s226, %s227
      %p238 = scmp.eq.s32.totalorder %s24, 0
      %p239 = por %p237, %p238
      %p240 = scmp.ne.s32.totalorder %s226, %s227
      %p241 = scmp.eq.s32.totalorder %s25, 1
      %p242 = por %p240, %p241
      %p244 = scmp.ne.s32.totalorder %s227, %s243
      %p245 = scmp.eq.s32.totalorder %s25, 0
      %p246 = por %p244, %p245
      %p247 = scmp.le.s32.totalorder 1, %s19
      %p248 = scmp.lt.s32.totalorder %s19, 3
      %p249 = pnand %p247, %p248
      %p250 = pneg %p249
      // Predicated region
      $region9: #{tpu_custom_call.1} parent=5 // pred_check
        _
      $region10: #{tpu_custom_call.1} parent=5 // pred_check_branch
        %252 = sbr.rel (%p249) target = $region12
      $region11: #{tpu_custom_call.1} parent=5 // pred_region
        %s253 = ssub.s32 %s19, 1
        // Predicated region
        $region13: #{tpu_custom_call.1} parent=11 // pred_check
          %p254 = pneg %p66
        $region14: #{tpu_custom_call.1} parent=11 // pred_check_branch
          %256 = sbr.rel (%p254) target = $region16
        $region15: #{tpu_custom_call.1} parent=11 // pred_region
          _
        $region16: #{tpu_custom_call.1} parent=11 // pred_fallthru
          _
        // Predicated region
        $region17: #{tpu_custom_call.1} parent=11 // pred_check
          %p257 = pneg %p87
        $region18: #{tpu_custom_call.1} parent=11 // pred_check_branch
          %259 = sbr.rel (%p257) target = $region20
        $region19: #{tpu_custom_call.1} parent=11 // pred_region
          _
        $region20: #{tpu_custom_call.1} parent=11 // pred_fallthru
          _
        // Predicated region
        $region21: #{tpu_custom_call.1} parent=11 // pred_check
          %p260 = pneg %p108
        $region22: #{tpu_custom_call.1} parent=11 // pred_check_branch
          %262 = sbr.rel (%p260) target = $region24
        $region23: #{tpu_custom_call.1} parent=11 // pred_region
          _
        $region24: #{tpu_custom_call.1} parent=11 // pred_fallthru
          _
        // Predicated region
        $region25: #{tpu_custom_call.1} parent=11 // pred_check
          %p263 = pneg %p129
        $region26: #{tpu_custom_call.1} parent=11 // pred_check_branch
          %265 = sbr.rel (%p263) target = $region28
        $region27: #{tpu_custom_call.1} parent=11 // pred_region
          _
        $region28: #{tpu_custom_call.1} parent=11 // pred_fallthru
          _
        // Predicated region
        $region29: #{tpu_custom_call.1} parent=11 // pred_check
          %p266 = pneg %p150
        $region30: #{tpu_custom_call.1} parent=11 // pred_check_branch
          %268 = sbr.rel (%p266) target = $region32
        $region31: #{tpu_custom_call.1} parent=11 // pred_region
          %s270 = ssub.s32 1024, 1024
          %271 = vsyncadd [#allocation3], %s270
          %s272 = sshll.u32 [#allocation2], 4
          %s273 = int_to_ptr.vmem [resolvable:$true] %s272
          %278 = dma.hbm_to_vmem [thread:$0]  %s5, 1024, %s273, [#allocation3], 64, 64, 4
        $region32: #{tpu_custom_call.1} parent=11 // pred_fallthru
          _
        // Predicated region
        $region33: #{tpu_custom_call.1} parent=11 // pred_check
          %p279 = pneg %p171
        $region34: #{tpu_custom_call.1} parent=11 // pred_check_branch
          %281 = sbr.rel (%p279) target = $region36
        $region35: #{tpu_custom_call.1} parent=11 // pred_region
          _
        $region36: #{tpu_custom_call.1} parent=11 // pred_fallthru
          _
        // Predicated region
        $region37: #{tpu_custom_call.1} parent=11 // pred_check
          %p282 = pneg %p192
        $region38: #{tpu_custom_call.1} parent=11 // pred_check_branch
          %284 = sbr.rel (%p282) target = $region40
        $region39: #{tpu_custom_call.1} parent=11 // pred_region
          _
        $region40: #{tpu_custom_call.1} parent=11 // pred_fallthru
          _
        // Predicated region
        $region41: #{tpu_custom_call.1} parent=11 // pred_check
          %p285 = pneg %p213
        $region42: #{tpu_custom_call.1} parent=11 // pred_check_branch
          %287 = sbr.rel (%p285) target = $region44
        $region43: #{tpu_custom_call.1} parent=11 // pred_region
          _
        $region44: #{tpu_custom_call.1} parent=11 // pred_fallthru
          _
      $region12: #{tpu_custom_call.1} parent=5 // pred_fallthru
        _
      %p288 = scmp.lt.s32.totalorder %s19, 2
      // Predicated region
      $region45: #{tpu_custom_call.1} parent=5 // pred_check
        %p289 = pneg %p288
      $region46: #{tpu_custom_call.1} parent=5 // pred_check_branch
        %291 = sbr.rel (%p289) target = $region48
      $region47: #{tpu_custom_call.1} parent=5 // pred_region
        // Predicated region
        $region49: #{tpu_custom_call.1} parent=47 // pred_check
          %p292 = pneg %p39
        $region50: #{tpu_custom_call.1} parent=47 // pred_check_branch
          %294 = sbr.rel (%p292) target = $region52
        $region51: #{tpu_custom_call.1} parent=47 // pred_region
          %p295 = scmp.lt.s32.totalorder %s19, 1
          %s296 = scalar_select %p295, %s19, 1
          %s297 = smul.addr %s296, 8
          %s298 = scalar_lea.vmem %s0, %s297
        $region52: #{tpu_custom_call.1} parent=47 // pred_fallthru
          _
      $region48: #{tpu_custom_call.1} parent=5 // pred_fallthru
        _
      %p299 = scmp.le.s32.totalorder 1, %s19
      %p300 = scmp.lt.s32.totalorder %s19, 3
      %p301 = pnand %p299, %p300
      %p302 = pneg %p301
      // Predicated region
      $region53: #{tpu_custom_call.1} parent=5 // pred_check
        _
      $region54: #{tpu_custom_call.1} parent=5 // pred_check_branch
        %304 = sbr.rel (%p301) target = $region56
      $region55: #{tpu_custom_call.1} parent=5 // pred_region
        %s305 = ssub.s32 %s19, 1
        // Predicated region
        $region57: #{tpu_custom_call.1} parent=55 // pred_check
          %p306 = pneg %p150
        $region58: #{tpu_custom_call.1} parent=55 // pred_check_branch
          %308 = sbr.rel (%p306) target = $region60
        $region59: #{tpu_custom_call.1} parent=55 // pred_region
          %309 = dma.done [#allocation3], 1024
        $region60: #{tpu_custom_call.1} parent=55 // pred_fallthru
          _
        %p310 = scmp.lt.s32.totalorder %s24, 1
        %s311 = scalar_select %p310, %s24, 1
        %s312 = smul.addr %s311, 8
        %s313 = scalar_lea.vmem %s0, %s312
        %p314 = pneg %p45
        %p315 = pneg %p42
        %p316 = pneg %p66
        %p317 = pneg %p63
        %p318 = pneg %p87
        %p319 = pneg %p84
        %p320 = pneg %p108
        %p321 = pneg %p105
        %p322 = pneg %p129
        %p323 = pneg %p126
        %p324 = pneg %p150
        %p325 = pneg %p147
        %p326 = pneg %p171
        %p327 = pneg %p168
        %p328 = pneg %p192
        %p329 = pneg %p189
        %p330 = pneg %p213
        %p331 = pneg %p210
        %p332 = pneg %p239
        %p333 = pneg %p236
        %s334 = sand.u32 %s226, 1
        %s335 = scalar_lea.sflag [#allocation4], %s334
        %s336 = sand.u32 %s226, 1
        %s337 = smul.addr %s336, 8
        %s338 = scalar_lea.vmem [#allocation5], %s337
        %p339 = scmp.lt.s32.totalorder %s24, 1
        %s340 = scalar_select %p339, %s24, 1
        %s341 = smul.addr %s340, 8
        %s342 = scalar_lea.vmem %s0, %s341
        %v344 = vld [vmem:[%s342] sm:$0xff]
        %v345 = vpack.c.bf16 %v344, %v344
        %v346 = vld [vmem:[%s1] sm:$0xf]
        %v347 = vld [vmem:[%s1 + $0x4] sm:$0xf]
        %v348 = vld [vmem:[%s1 + $0x8] sm:$0xf]
        %v349 = vld [vmem:[%s1 + $0xc] sm:$0xf]
        %v350 = vld [vmem:[%s1 + $0x10] sm:$0x1]
        %v351 = vld [vmem:[%s2] sm:$0x1]
        %v353 = vlaneseq
        %v354 = vshrl.u32 %v353, 7
        %v355 = vsub.s32 0, %v354
        %v356 = vrot.slane %v351, %v355
        %v363 = vunpack.c.l.b16 %v346
        %v364 = vunpack.c.l.b16 %v347
        %v365 = vunpack.c.l.b16 %v348
        %v366 = vunpack.c.l.b16 %v349
        %v367 = vunpack.c.l.b16 %v350
        %v368 = vpack.c.b16 %v364, %v363
        %v369 = vpack.c.b16 %v366, %v365
        %v370 = vpack.c.b16 %v367, %v367
        %vm373 = vcmask 269312
        %v375 = vsel %vm373, %v345, 0
        %vm377 = vcmask 1040384
        %v378 = vsel 0, 4294967295, 65535
        %v379 = vsel %vm377, %v378, 0
        %v381 = vand.u32 %v370, %v379
        %383 = vmatprep.subr.bf16.mxu0 0
        %384 = vmatpush1.bf16.msra.mxu0 %v368
        %385 = vmatprep.subr.bf16.mxu0 0
        %386 = vmatpush1.bf16.msra.mxu0 %v369
        %387 = vmatprep.subr.bf16.mxu0 0
        %388 = vmatpush1.bf16.msra.mxu0 %v381
        %389 = vmatprep.subr.bf16.mxu0 0
        %390 = vmatpush1.bf16.msra.mxu0 0
        %391 = vmatprep.subr.bf16.mxu0 0
        %392 = vmatpush1.bf16.msra.mxu0 0
        %393 = vmatprep.subr.bf16.mxu0 0
        %394 = vmatpush1.bf16.msra.mxu0 0
        %395 = vmatprep.subr.bf16.mxu0 0
        %396 = vmatpush1.bf16.msra.mxu0 0
        %397 = vmatprep.subr.bf16.mxu0 0
        %398 = vmatpush1.bf16.msra.mxu0 0
        %399 = vmatprep.subr.bf16.mxu0 0
        %400 = vmatpush1.bf16.msra.mxu0 0
        %401 = vmatprep.subr.bf16.mxu0 0
        %402 = vmatpush1.bf16.msra.mxu0 0
        %403 = vmatprep.subr.bf16.mxu0 0
        %404 = vmatpush1.bf16.msra.mxu0 0
        %405 = vmatprep.subr.bf16.mxu0 0
        %406 = vmatpush1.bf16.msra.mxu0 0
        %407 = vmatprep.subr.bf16.mxu0 0
        %408 = vmatpush1.bf16.msra.mxu0 0
        %409 = vmatprep.subr.bf16.mxu0 0
        %410 = vmatpush1.bf16.msra.mxu0 0
        %411 = vmatprep.subr.bf16.mxu0 0
        %412 = vmatpush1.bf16.msra.mxu0 0
        %413 = vmatprep.subr.bf16.mxu0 0
        %414 = vmatpush1.bf16.msra.mxu0 0
        %415 = vmatprep.mubr.bf16.mxu0 0
        %416 = vmatmul.mubr.bf16.gmra.mrb[0].mxu0 %v375
        %v417 = vpop.f32.mrb[0].mxu0
        %v418 = vadd.f32 %v356, %v417
        %v419 = vpop.f32.mrb[0].mxu0
        %v420 = vpop.f32.mrb[0].mxu0
        %v421 = vpop.f32.mrb[0].mxu0
        %422 = vdwg.mxu0
        %v423 = vpack.c.bf16 %v418, %v418
        %v424 = vtanh.bf16.pop %v423
        %v425 = vld [vmem:[%s3] sm:$0xf]
        %v426 = vld [vmem:[%s3 + $0x4] sm:$0xf]
        %v427 = vld [vmem:[%s3 + $0x8] sm:$0xf]
        %v428 = vld [vmem:[%s3 + $0xc] sm:$0xf]
        %v429 = vld [vmem:[%s3 + $0x10] sm:$0xf]
        %v430 = vld [vmem:[%s3 + $0x14] sm:$0xf]
        %v431 = vld [vmem:[%s3 + $0x18] sm:$0xf]
        %v432 = vld [vmem:[%s3 + $0x1c] sm:$0xf]
        %v433 = vld [vmem:[%s3 + $0x20] sm:$0xf]
        %v434 = vld [vmem:[%s3 + $0x24] sm:$0xf]
        %v435 = vld [vmem:[%s3 + $0x28] sm:$0xf]
        %v436 = vld [vmem:[%s3 + $0x2c] sm:$0xf]
        %v437 = vld [vmem:[%s3 + $0x30] sm:$0xf]
        %v438 = vld [vmem:[%s3 + $0x34] sm:$0xf]
        %v439 = vld [vmem:[%s3 + $0x38] sm:$0xf]
        %v440 = vld [vmem:[%s3 + $0x3c] sm:$0xf]
        %v441 = vld [vmem:[%s4] sm:$0x1]
        %v443 = vlaneseq
        %v444 = vshrl.u32 %v443, 7
        %v445 = vsub.s32 0, %v444
        %v446 = vrot.slane %v441, %v445
        %v464 = vunpack.c.l.b16 %v425
        %v465 = vunpack.c.l.b16 %v426
        %v466 = vunpack.c.l.b16 %v427
        %v467 = vunpack.c.l.b16 %v428
        %v468 = vunpack.c.l.b16 %v429
        %v469 = vunpack.c.l.b16 %v430
        %v470 = vunpack.c.l.b16 %v431
        %v471 = vunpack.c.l.b16 %v432
        %v472 = vunpack.c.l.b16 %v433
        %v473 = vunpack.c.l.b16 %v434
        %v474 = vunpack.c.l.b16 %v435
        %v475 = vunpack.c.l.b16 %v436
        %v476 = vunpack.c.l.b16 %v437
        %v477 = vunpack.c.l.b16 %v438
        %v478 = vunpack.c.l.b16 %v439
        %v479 = vunpack.c.l.b16 %v440
        %v480 = vpack.c.b16 %v465, %v464
        %v481 = vpack.c.b16 %v467, %v466
        %v482 = vpack.c.b16 %v469, %v468
        %v483 = vpack.c.b16 %v471, %v470
        %v484 = vpack.c.b16 %v473, %v472
        %v485 = vpack.c.b16 %v475, %v474
        %v486 = vpack.c.b16 %v477, %v476
        %v487 = vpack.c.b16 %v479, %v478
        %496 = vmatprep.subr.bf16.mxu0 0
        %497 = vmatpush1.bf16.msra.mxu0 %v480
        %498 = vmatprep.subr.bf16.mxu0 0
        %499 = vmatpush1.bf16.msra.mxu0 %v481
        %500 = vmatprep.subr.bf16.mxu0 0
        %501 = vmatpush1.bf16.msra.mxu0 %v482
        %502 = vmatprep.subr.bf16.mxu0 0
        %503 = vmatpush1.bf16.msra.mxu0 %v483
        %504 = vmatprep.subr.bf16.mxu0 0
        %505 = vmatpush1.bf16.msra.mxu0 %v484
        %506 = vmatprep.subr.bf16.mxu0 0
        %507 = vmatpush1.bf16.msra.mxu0 %v485
        %508 = vmatprep.subr.bf16.mxu0 0
        %509 = vmatpush1.bf16.msra.mxu0 %v486
        %510 = vmatprep.subr.bf16.mxu0 0
        %511 = vmatpush1.bf16.msra.mxu0 %v487
        %512 = vmatprep.subr.bf16.mxu0 0
        %513 = vmatpush1.bf16.msra.mxu0 0
        %514 = vmatprep.subr.bf16.mxu0 0
        %515 = vmatpush1.bf16.msra.mxu0 0
        %516 = vmatprep.subr.bf16.mxu0 0
        %517 = vmatpush1.bf16.msra.mxu0 0
        %518 = vmatprep.subr.bf16.mxu0 0
        %519 = vmatpush1.bf16.msra.mxu0 0
        %520 = vmatprep.subr.bf16.mxu0 0
        %521 = vmatpush1.bf16.msra.mxu0 0
        %522 = vmatprep.subr.bf16.mxu0 0
        %523 = vmatpush1.bf16.msra.mxu0 0
        %524 = vmatprep.subr.bf16.mxu0 0
        %525 = vmatpush1.bf16.msra.mxu0 0
        %526 = vmatprep.subr.bf16.mxu0 0
        %527 = vmatpush1.bf16.msra.mxu0 0
        %528 = vmatprep.mubr.bf16.mxu0 0
        %529 = vmatmul.mubr.bf16.gmra.mrb[0].mxu0 %v424
        %v530 = vpop.f32.mrb[0].mxu0
        %v531 = vadd.f32 %v446, %v530
        %v532 = vpop.f32.mrb[0].mxu0
        %v533 = vpop.f32.mrb[0].mxu0
        %v534 = vpop.f32.mrb[0].mxu0
        %535 = vdwg.mxu0
        %v536 = vpack.c.bf16 %v531, %v531
        %v537 = vtanh.bf16.pop %v536
        %v538 = vld [vmem:[#allocation2] sm:$0xf]
        %v539 = vld [vmem:[#allocation2 + $0x4] sm:$0xf]
        %v540 = vld [vmem:[#allocation2 + $0x8] sm:$0xf]
        %v541 = vld [vmem:[#allocation2 + $0xc] sm:$0xf]
        %v542 = vld [vmem:[#allocation2 + $0x10] sm:$0xf]
        %v543 = vld [vmem:[#allocation2 + $0x14] sm:$0xf]
        %v544 = vld [vmem:[#allocation2 + $0x18] sm:$0xf]
        %v545 = vld [vmem:[#allocation2 + $0x1c] sm:$0xf]
        %v546 = vld [vmem:[#allocation2 + $0x20] sm:$0xf]
        %v547 = vld [vmem:[#allocation2 + $0x24] sm:$0xf]
        %v548 = vld [vmem:[#allocation2 + $0x28] sm:$0xf]
        %v549 = vld [vmem:[#allocation2 + $0x2c] sm:$0xf]
        %v550 = vld [vmem:[#allocation2 + $0x30] sm:$0xf]
        %v551 = vld [vmem:[#allocation2 + $0x34] sm:$0xf]
        %v552 = vld [vmem:[#allocation2 + $0x38] sm:$0xf]
        %v553 = vld [vmem:[#allocation2 + $0x3c] sm:$0xf]
        %v554 = vld [vmem:[%s6] sm:$0x1]
        %v556 = vlaneseq
        %v557 = vshrl.u32 %v556, 7
        %v558 = vsub.s32 0, %v557
        %v559 = vrot.slane %v554, %v558
        %v577 = vunpack.c.l.b16 %v538
        %v578 = vunpack.c.l.b16 %v539
        %v579 = vunpack.c.l.b16 %v540
        %v580 = vunpack.c.l.b16 %v541
        %v581 = vunpack.c.l.b16 %v542
        %v582 = vunpack.c.l.b16 %v543
        %v583 = vunpack.c.l.b16 %v544
        %v584 = vunpack.c.l.b16 %v545
        %v585 = vunpack.c.l.b16 %v546
        %v586 = vunpack.c.l.b16 %v547
        %v587 = vunpack.c.l.b16 %v548
        %v588 = vunpack.c.l.b16 %v549
        %v589 = vunpack.c.l.b16 %v550
        %v590 = vunpack.c.l.b16 %v551
        %v591 = vunpack.c.l.b16 %v552
        %v592 = vunpack.c.l.b16 %v553
        %v593 = vpack.c.b16 %v578, %v577
        %v594 = vpack.c.b16 %v580, %v579
        %v595 = vpack.c.b16 %v582, %v581
        %v596 = vpack.c.b16 %v584, %v583
        %v597 = vpack.c.b16 %v586, %v585
        %v598 = vpack.c.b16 %v588, %v587
        %v599 = vpack.c.b16 %v590, %v589
        %v600 = vpack.c.b16 %v592, %v591
        %609 = vmatprep.subr.bf16.mxu0 0
        %610 = vmatpush1.bf16.msra.mxu0 %v593
        %611 = vmatprep.subr.bf16.mxu0 0
        %612 = vmatpush1.bf16.msra.mxu0 %v594
        %613 = vmatprep.subr.bf16.mxu0 0
        %614 = vmatpush1.bf16.msra.mxu0 %v595
        %615 = vmatprep.subr.bf16.mxu0 0
        %616 = vmatpush1.bf16.msra.mxu0 %v596
        %617 = vmatprep.subr.bf16.mxu0 0
        %618 = vmatpush1.bf16.msra.mxu0 %v597
        %619 = vmatprep.subr.bf16.mxu0 0
        %620 = vmatpush1.bf16.msra.mxu0 %v598
        %621 = vmatprep.subr.bf16.mxu0 0
        %622 = vmatpush1.bf16.msra.mxu0 %v599
        %623 = vmatprep.subr.bf16.mxu0 0
        %624 = vmatpush1.bf16.msra.mxu0 %v600
        %625 = vmatprep.subr.bf16.mxu0 0
        %626 = vmatpush1.bf16.msra.mxu0 0
        %627 = vmatprep.subr.bf16.mxu0 0
        %628 = vmatpush1.bf16.msra.mxu0 0
        %629 = vmatprep.subr.bf16.mxu0 0
        %630 = vmatpush1.bf16.msra.mxu0 0
        %631 = vmatprep.subr.bf16.mxu0 0
        %632 = vmatpush1.bf16.msra.mxu0 0
        %633 = vmatprep.subr.bf16.mxu0 0
        %634 = vmatpush1.bf16.msra.mxu0 0
        %635 = vmatprep.subr.bf16.mxu0 0
        %636 = vmatpush1.bf16.msra.mxu0 0
        %637 = vmatprep.subr.bf16.mxu0 0
        %638 = vmatpush1.bf16.msra.mxu0 0
        %639 = vmatprep.subr.bf16.mxu0 0
        %640 = vmatpush1.bf16.msra.mxu0 0
        %641 = vmatprep.mubr.bf16.mxu0 0
        %642 = vmatmul.mubr.bf16.gmra.mrb[0].mxu0 %v537
        %v643 = vpop.f32.mrb[0].mxu0
        %v644 = vadd.f32 %v559, %v643
        %v645 = vpop.f32.mrb[0].mxu0
        %v646 = vpop.f32.mrb[0].mxu0
        %v647 = vpop.f32.mrb[0].mxu0
        %648 = vdwg.mxu0
        %v649 = vpack.c.bf16 %v644, %v644
        %v650 = vtanh.bf16.pop %v649
        %v651 = vld [vmem:[%s7] sm:$0xf]
        %v652 = vld [vmem:[%s7 + $0x4] sm:$0xf]
        %v653 = vld [vmem:[%s7 + $0x8] sm:$0xf]
        %v654 = vld [vmem:[%s7 + $0xc] sm:$0xf]
        %v655 = vld [vmem:[%s7 + $0x10] sm:$0xf]
        %v656 = vld [vmem:[%s7 + $0x14] sm:$0xf]
        %v657 = vld [vmem:[%s7 + $0x18] sm:$0xf]
        %v658 = vld [vmem:[%s7 + $0x1c] sm:$0xf]
        %v659 = vld [vmem:[%s7 + $0x20] sm:$0xf]
        %v660 = vld [vmem:[%s7 + $0x24] sm:$0xf]
        %v661 = vld [vmem:[%s7 + $0x28] sm:$0xf]
        %v662 = vld [vmem:[%s7 + $0x2c] sm:$0xf]
        %v663 = vld [vmem:[%s7 + $0x30] sm:$0xf]
        %v664 = vld [vmem:[%s7 + $0x34] sm:$0xf]
        %v665 = vld [vmem:[%s7 + $0x38] sm:$0xf]
        %v666 = vld [vmem:[%s7 + $0x3c] sm:$0xf]
        %v667 = vld [vmem:[%s8] sm:$0x1]
        %v669 = vlaneseq
        %v670 = vshrl.u32 %v669, 7
        %v671 = vsub.s32 0, %v670
        %v672 = vrot.slane %v667, %v671
        %v690 = vunpack.c.l.b16 %v651
        %v691 = vunpack.c.l.b16 %v652
        %v692 = vunpack.c.l.b16 %v653
        %v693 = vunpack.c.l.b16 %v654
        %v694 = vunpack.c.l.b16 %v655
        %v695 = vunpack.c.l.b16 %v656
        %v696 = vunpack.c.l.b16 %v657
        %v697 = vunpack.c.l.b16 %v658
        %v698 = vunpack.c.l.b16 %v659
        %v699 = vunpack.c.l.b16 %v660
        %v700 = vunpack.c.l.b16 %v661
        %v701 = vunpack.c.l.b16 %v662
        %v702 = vunpack.c.l.b16 %v663
        %v703 = vunpack.c.l.b16 %v664
        %v704 = vunpack.c.l.b16 %v665
        %v705 = vunpack.c.l.b16 %v666
        %v706 = vpack.c.b16 %v691, %v690
        %v707 = vpack.c.b16 %v693, %v692
        %v708 = vpack.c.b16 %v695, %v694
        %v709 = vpack.c.b16 %v697, %v696
        %v710 = vpack.c.b16 %v699, %v698
        %v711 = vpack.c.b16 %v701, %v700
        %v712 = vpack.c.b16 %v703, %v702
        %v713 = vpack.c.b16 %v705, %v704
        %722 = vmatprep.subr.bf16.mxu0 0
        %723 = vmatpush1.bf16.msra.mxu0 %v706
        %724 = vmatprep.subr.bf16.mxu0 0
        %725 = vmatpush1.bf16.msra.mxu0 %v707
        %726 = vmatprep.subr.bf16.mxu0 0
        %727 = vmatpush1.bf16.msra.mxu0 %v708
        %728 = vmatprep.subr.bf16.mxu0 0
        %729 = vmatpush1.bf16.msra.mxu0 %v709
        %730 = vmatprep.subr.bf16.mxu0 0
        %731 = vmatpush1.bf16.msra.mxu0 %v710
        %732 = vmatprep.subr.bf16.mxu0 0
        %733 = vmatpush1.bf16.msra.mxu0 %v711
        %734 = vmatprep.subr.bf16.mxu0 0
        %735 = vmatpush1.bf16.msra.mxu0 %v712
        %736 = vmatprep.subr.bf16.mxu0 0
        %737 = vmatpush1.bf16.msra.mxu0 %v713
        %738 = vmatprep.subr.bf16.mxu0 0
        %739 = vmatpush1.bf16.msra.mxu0 0
        %740 = vmatprep.subr.bf16.mxu0 0
        %741 = vmatpush1.bf16.msra.mxu0 0
        %742 = vmatprep.subr.bf16.mxu0 0
        %743 = vmatpush1.bf16.msra.mxu0 0
        %744 = vmatprep.subr.bf16.mxu0 0
        %745 = vmatpush1.bf16.msra.mxu0 0
        %746 = vmatprep.subr.bf16.mxu0 0
        %747 = vmatpush1.bf16.msra.mxu0 0
        %748 = vmatprep.subr.bf16.mxu0 0
        %749 = vmatpush1.bf16.msra.mxu0 0
        %750 = vmatprep.subr.bf16.mxu0 0
        %751 = vmatpush1.bf16.msra.mxu0 0
        %752 = vmatprep.subr.bf16.mxu0 0
        %753 = vmatpush1.bf16.msra.mxu0 0
        %754 = vmatprep.mubr.bf16.mxu0 0
        %755 = vmatmul.mubr.bf16.gmra.mrb[0].mxu0 %v650
        %v756 = vpop.f32.mrb[0].mxu0
        %v757 = vadd.f32 %v672, %v756
        %v758 = vpop.f32.mrb[0].mxu0
        %v759 = vpop.f32.mrb[0].mxu0
        %v760 = vpop.f32.mrb[0].mxu0
        %761 = vdwg.mxu0
        %v762 = vpack.c.bf16 %v757, %v757
        %v763 = vtanh.bf16.pop %v762
        %v764 = vunpack.c.l.bf16 %v763
        %vm765 = vcmask 523264
        %766 = vst.msk [vmem:[%s338] sm:$0xff] %vm765, %v764
        %s767 = sand.u32 %s226, 1
        %s768 = scalar_lea.sflag [#allocation4], %s767
        %s769 = sand.u32 %s226, 1
        %s770 = smul.addr %s769, 8
        %s771 = scalar_lea.vmem [#allocation5], %s770
        // Predicated region
        $region61: #{tpu_custom_call.1} parent=55 // pred_check
          %p772 = pneg %p236
        $region62: #{tpu_custom_call.1} parent=55 // pred_check_branch
          %774 = sbr.rel (%p772) target = $region64
        $region63: #{tpu_custom_call.1} parent=55 // pred_region
          %s776 = ssub.s32 128, 128
          %777 = vsyncadd %s768, %s776
          %s778 = smul.addr %s24, 128
          %s779 = scalar_lea.hbm %s9, %s778
          %s781 = sshll.u32 %s771, 4
          %s782 = int_to_ptr.vmem [resolvable:$true] %s781
          %784 = dma.vmem_to_hbm [thread:$0]  %s782, 128, %s779, %s768
        $region64: #{tpu_custom_call.1} parent=55 // pred_fallthru
          _
      $region56: #{tpu_custom_call.1} parent=5 // pred_fallthru
        _
      %p785 = scmp.le.s32.totalorder 2, %s19
      // Predicated region
      $region65: #{tpu_custom_call.1} parent=5 // pred_check
        %p786 = pneg %p785
      $region66: #{tpu_custom_call.1} parent=5 // pred_check_branch
        %788 = sbr.rel (%p786) target = $region68
      $region67: #{tpu_custom_call.1} parent=5 // pred_region
        %s789 = ssub.s32 %s19, 2
        // Predicated region
        $region69: #{tpu_custom_call.1} parent=67 // pred_check
          %p790 = pneg %p242
        $region70: #{tpu_custom_call.1} parent=67 // pred_check_branch
          %792 = sbr.rel (%p790) target = $region72
        $region71: #{tpu_custom_call.1} parent=67 // pred_region
          %s793 = sand.u32 %s227, 1
          %s794 = scalar_lea.sflag [#allocation4], %s793
          %s795 = sand.u32 %s227, 1
          %s796 = smul.addr %s795, 8
          %s797 = scalar_lea.vmem [#allocation5], %s796
          %798 = dma.done %s794, 128
        $region72: #{tpu_custom_call.1} parent=67 // pred_fallthru
          _
      $region68: #{tpu_custom_call.1} parent=5 // pred_fallthru
        _
    $region6: #{tpu_custom_call.1} parent=1 // loop_footer
      %s23 = sadd.s32 1, %s19
    $region7: #{tpu_custom_call.1} parent=1 // loop_footer_branch
      %18 = sbr.rel target = $region3
    $region8: #{tpu_custom_call.1} parent=1 // loop_exit
      _
    %799 = vsyncpa [#allocation3], 1
    %s800 = scalar_lea.sflag [#allocation3], 1
    %801 = vsyncpa %s800, 1
    %802 = vsyncpa [#allocation4], 1
    %s803 = scalar_lea.sflag [#allocation4], 1
    %804 = vsyncpa %s803, 1

</llo_original>
